<compile_context>
chip_gen: v6e
topology: v6e:2x2x1
jax: 0.10.0
libtpu: 0.0.40
codegen_flags: <defaults>
</compile_context>

<pallas_src>
import functools

import jax
import jax.numpy as jnp
from jax.experimental import pallas as pl
from jax.experimental.pallas import tpu as pltpu


def net_kernel(xs_ref, w_ref, pt_ref, wcl_ref, sel_ref, bias_ref, out_ref,
               *, NC, BP, NCp, log_clamp):
    # Fused temporal conv + spatial conv + BatchNorm + bias (ones row): one bf16 MXU matmul.
    h = jnp.dot(w_ref[...], xs_ref[...], preferred_element_type=jnp.float32)   # (F2, BP*Lpad) f32

    # ActSquare, then AvgPool over time as one lane-dense bf16 matmul with the {0,1}
    # block-diagonal pooling matrix (1/pk average folded into log_clamp / classifier bias).
    y = (h * h).astype(jnp.bfloat16)
    pooled = jnp.dot(y, pt_ref[...], preferred_element_type=jnp.float32)       # (F2, BP*Wpp) f32

    # ActLog (clamp threshold pre-scaled by pk).
    z = jnp.log(jnp.maximum(pooled, log_clamp))
    # TODO(synk): nn.Dropout(0.25) is the eval-mode identity; not implemented stochastically.

    # Classifier Conv2d(F2, NC, (1, Wp)): ONE elementwise multiply against lane-stacked
    # classifier weights, ONE selector matmul (sums pooled width, scatters per-(sample,
    # class) sums into lanes), ONE sublane reduction.  No per-class serialized reduce chains.
    zt = jnp.concatenate([z] * NC, axis=1)                                     # (F2, NC*BP*Wpp)
    prod = zt * wcl_ref[...]                                                   # f32
    q = jnp.dot(prod, sel_ref[...], preferred_element_type=jnp.float32)        # (F2, BP*NCp)
    row = jnp.sum(q, axis=0, keepdims=True) + bias_ref[...]                    # (1, BP*NCp)

    # LogSoftmax over classes, one 128-lane block per packed sample.  Padded lanes hold
    # -1e30 (f32 sentinel) from the bias row, so exp underflows to exactly 0.
    for b in range(BP):
        blk = row[:, b * NCp:(b + 1) * NCp]
        m = jnp.max(blk, axis=1, keepdims=True)
        lse = m + jnp.log(jnp.sum(jnp.exp(blk - m), axis=1, keepdims=True))
        out_ref[:, b * NCp:(b + 1) * NCp] = blk - lse


def torch_renorm_dim0(w, maxnorm=2.0):
    """torch.renorm(w, p=2, dim=0, maxnorm) for Conv2dWithConstraint."""
    flat = w.reshape(w.shape[0], -1)
    norms = jnp.sqrt(jnp.sum(flat * flat, axis=1, keepdims=True))
    scale = jnp.where(norms > maxnorm, maxnorm / norms, 1.0)
    return (flat * scale).reshape(w.shape)


def build_params(key, *, num_classes, num_channels, F1, F2, K1, Wp):
    ks = jax.random.split(key, 10)
    w1 = torch_renorm_dim0(jax.random.normal(ks[0], (F1, 1, 1, K1)) * 0.2)
    b1 = jax.random.normal(ks[1], (F1,)) * 0.1
    w2 = torch_renorm_dim0(jax.random.normal(ks[2], (F2, F1, num_channels, 1)) * 0.2)
    b2 = jax.random.normal(ks[3], (F2,)) * 0.1
    gamma = jax.random.uniform(ks[4], (F2,), minval=0.5, maxval=1.5)
    beta = jax.random.normal(ks[5], (F2,)) * 0.1
    run_mean = jax.random.normal(ks[6], (F2,)) * 0.1
    run_var = jax.random.uniform(ks[7], (F2,), minval=0.5, maxval=1.5)
    wc = jax.random.normal(ks[8], (num_classes, F2, 1, Wp)) * 0.1
    bc = jax.random.normal(ks[9], (num_classes,)) * 0.1
    return dict(w1=w1, b1=b1, w2=w2, b2=b2, gamma=gamma, beta=beta,
                run_mean=run_mean, run_var=run_var, wc=wc, bc=bc)


def net_forward_pallas(x, params, *, num_channels, sampling_rate, num_classes,
                       F1=40, F2=40, bn_eps=1e-5, act_eps=1e-6, batch_pack=2):
    B, _, C, T = x.shape
    assert C == num_channels
    K1 = int(sampling_rate * 0.12)
    pk = int(sampling_rate * 0.3)
    ps = int(sampling_rate * 0.3 * (1 - 0.7))
    Wp = (T - pk) // ps + 1
    assert Wp == 31, "time length must make the (1,31) classifier conv output width 1"
    NC = num_classes

    LANES = 128
    Lpad = ((T + LANES - 1) // LANES) * LANES      # lane-padded time axis
    Wpp = ((Wp + LANES - 1) // LANES) * LANES      # lane-padded pool width
    NCp = ((NC + LANES - 1) // LANES) * LANES      # lane-padded class axis
    BP = batch_pack                                # samples lane-packed per grid step
    G = -(-B // BP)
    Bp = G * BP
    R = ((K1 * C + 1 + 7) // 8) * 8                # shifted rows + ones row, 8-sublane aligned

    # ---- shifted-input matrix precomputed in glue (no in-kernel shift / concat) ----
    left = (K1 - 1) // 2
    right = (K1 - 1) - left                        # PyTorch 'same' asymmetric pad
    x2 = x[:, 0, :, :].astype(jnp.float32)         # (B, C, T)
    if Bp != B:
        x2 = jnp.pad(x2, ((0, Bp - B), (0, 0), (0, 0)))
    xp = jnp.pad(x2, ((0, 0), (0, 0), (left, right)))                     # (Bp, C, T+K1-1)
    xs = jnp.stack([xp[:, :, k:k + T] for k in range(K1)], axis=1)        # (Bp, K1, C, T)
    xs = xs.reshape(Bp, K1 * C, T)
    xs_full = jnp.zeros((Bp, R, Lpad), jnp.float32)
    xs_full = xs_full.at[:, :K1 * C, :T].set(xs)
    xs_full = xs_full.at[:, K1 * C, :].set(1.0)                           # ones row -> bias fold
    xs_packed = (xs_full.reshape(G, BP, R, Lpad).transpose(0, 2, 1, 3)
                 .reshape(G, R, BP * Lpad).astype(jnp.bfloat16))

    # ---- conv1 + conv2 + BatchNorm + both biases fused into one (F2, R) bf16 weight ----
    w1m = params["w1"].reshape(F1, K1)                                    # (F1, K1)
    w2m = params["w2"][:, :, :, 0]                                        # (F2, F1, C)
    bn_scale = params["gamma"] / jnp.sqrt(params["run_var"] + bn_eps)
    bn_shift = params["beta"] - params["run_mean"] * bn_scale
    weff = jnp.einsum("gfc,fk->gkc", w2m, w1m).reshape(F2, K1 * C) * bn_scale[:, None]
    beff = (params["b2"] + jnp.einsum("gfc,f->g", w2m, params["b1"])) * bn_scale + bn_shift
    w_ext = (jnp.zeros((F2, R), jnp.float32)
             .at[:, :K1 * C].set(weff).at[:, K1 * C].set(beff)).astype(jnp.bfloat16)

    # ---- {0,1} bf16 block-diagonal pooling (sum) matrix; averaging folded out ----
    t_idx = jnp.arange(Lpad)[:, None]
    w_idx = jnp.arange(Wpp)[None, :]
    pt1 = ((w_idx < Wp) & (t_idx < T) & (t_idx >= w_idx * ps)
           & (t_idx < w_idx * ps + pk)).astype(jnp.float32)               # (Lpad, Wpp)
    pt = jnp.zeros((BP * Lpad, BP * Wpp), jnp.float32)
    for b in range(BP):
        pt = pt.at[b * Lpad:(b + 1) * Lpad, b * Wpp:(b + 1) * Wpp].set(pt1)
    pt = pt.astype(jnp.bfloat16)

    # ---- classifier weights stacked along lanes: lane = class*(BP*Wpp) + sample*Wpp + w ----
    wc = params["wc"][:, :, 0, :]                                         # (NC, F2, Wp)
    wc_pad = jnp.zeros((NC, F2, Wpp), jnp.float32).at[:, :, :Wp].set(wc)
    wcl = (jnp.tile(wc_pad[:, :, None, :], (1, 1, BP, 1))                 # (NC, F2, BP, Wpp)
           .transpose(1, 0, 2, 3).reshape(F2, NC * BP * Wpp))

    # ---- selector: sums each (class, sample) lane block into output lane sample*NCp+class ----
    l = jnp.arange(NC * BP * Wpp)
    rep = l // (BP * Wpp)
    bb = (l % (BP * Wpp)) // Wpp
    sel = jax.nn.one_hot(bb * NCp + rep, BP * NCp, dtype=jnp.float32)     # (NC*BP*Wpp, BP*NCp)

    # ---- classifier bias (with folded log(pk) pooling shift) + -1e30 padded-lane mask ----
    bc_eff = params["bc"] - jnp.log(float(pk)) * jnp.sum(wc, axis=(1, 2))
    bias1 = jnp.full((NCp,), -1e30, jnp.float32).at[:NC].set(bc_eff)
    bias_row = jnp.tile(bias1, (BP,))[None, :]                            # (1, BP*NCp)

    kernel = functools.partial(net_kernel, NC=NC, BP=BP, NCp=NCp,
                               log_clamp=float(act_eps * pk))

    out = pl.pallas_call(
        kernel,
        out_shape=jax.ShapeDtypeStruct((G, 1, BP * NCp), jnp.float32),
        grid=(G,),
        in_specs=[
            pl.BlockSpec((None, R, BP * Lpad), lambda g: (g, 0, 0)),      # packed shifted input
            pl.BlockSpec((F2, R), lambda g: (0, 0)),                      # fused conv+BN weight
            pl.BlockSpec((BP * Lpad, BP * Wpp), lambda g: (0, 0)),        # pooling matrix
            pl.BlockSpec((F2, NC * BP * Wpp), lambda g: (0, 0)),          # classifier weights
            pl.BlockSpec((NC * BP * Wpp, BP * NCp), lambda g: (0, 0)),    # selector
            pl.BlockSpec((1, BP * NCp), lambda g: (0, 0)),                # bias + lane mask
        ],
        out_specs=pl.BlockSpec((None, 1, BP * NCp), lambda g: (g, 0, 0)),
        compiler_params=pltpu.CompilerParams(dimension_semantics=("parallel",)),
    )(xs_packed, w_ext, pt, wcl, sel, bias_row)

    return out.reshape(Bp, NCp)[:B, :NC]


def net_forward_reference(x, params, *, num_channels, sampling_rate, num_classes,
                          F1=40, F2=40, bn_eps=1e-5, act_eps=1e-6):
    """Pure-JAX f32 reference with identical semantics (for a sanity check)."""
    B, _, C, T = x.shape
    K1 = int(sampling_rate * 0.12)
    pk = int(sampling_rate * 0.3)
    ps = int(sampling_rate * 0.3 * (1 - 0.7))
    Wp = (T - pk) // ps + 1
    left = (K1 - 1) // 2
    right = (K1 - 1) - left
    xp = jnp.pad(x[:, 0, :, :], ((0, 0), (0, 0), (left, right)))
    w1 = params["w1"].reshape(F1, K1)
    h1 = params["b1"][None, :, None, None] + sum(
        w1[:, k][None, :, None, None] * xp[:, None, :, k:k + T] for k in range(K1))
    h2 = jnp.einsum("bfct,gfc->bgt", h1, params["w2"][:, :, :, 0]) + params["b2"][None, :, None]
    scale = params["gamma"] / jnp.sqrt(params["run_var"] + bn_eps)
    shift = params["beta"] - params["run_mean"] * scale
    y = (h2 * scale[None, :, None] + shift[None, :, None]) ** 2
    t_idx = jnp.arange(T)[:, None]
    w_idx = jnp.arange(Wp)[None, :]
    pt = (((t_idx >= w_idx * ps) & (t_idx < w_idx * ps + pk)).astype(jnp.float32) / float(pk))
    pooled = jnp.einsum("bgt,tw->bgw", y, pt)
    z = jnp.log(jnp.maximum(pooled, act_eps))
    logits = jnp.einsum("bgw,jgw->bj", z, params["wc"][:, :, 0, :]) + params["bc"][None, :]
    return jax.nn.log_softmax(logits, axis=1)


if __name__ == "__main__":
    num_classes = 2
    num_channels = 4
    sampling_rate = 25          # -> conv kernel 3, pool kernel 7, pool stride 2
    B = 2
    T = 67                      # chosen so pooled width == 31 (classifier conv -> width 1)
    F1 = F2 = 40
    K1 = int(sampling_rate * 0.12)
    pk = int(sampling_rate * 0.3)
    ps = int(sampling_rate * 0.3 * (1 - 0.7))
    Wp = (T - pk) // ps + 1

    key = jax.random.PRNGKey(0)
    pkey, xkey = jax.random.split(key)
    params = build_params(pkey, num_classes=num_classes, num_channels=num_channels,
                          F1=F1, F2=F2, K1=K1, Wp=Wp)
    x = jax.random.normal(xkey, (B, 1, num_channels, T), dtype=jnp.float32)

    out = net_forward_pallas(x, params, num_channels=num_channels,
                             sampling_rate=sampling_rate, num_classes=num_classes)
    out = jax.block_until_ready(out)

    ref = net_forward_reference(x, params, num_channels=num_channels,
                                sampling_rate=sampling_rate, num_classes=num_classes)
    ref = jax.block_until_ready(ref)

    assert out.shape == (B, num_classes)
    assert bool(jnp.all(jnp.isfinite(out)))
    # bf16 MXU operands (conv + pooling matmuls) -> slightly looser tolerance than pure f32
    assert bool(jnp.allclose(out, ref, atol=5e-2, rtol=5e-2)), (out, ref)
    print("KERNEL_OK")
</pallas_src>

<mosaic_0001>
module attributes {stable_mosaic.version = 11 : i64} {
  func.func @net_kernel(%arg0: i32, %arg1: memref<1x16x256xbf16, #tpu.memory_space<vmem>>, %arg2: memref<40x16xbf16, #tpu.memory_space<vmem>>, %arg3: memref<256x256xbf16, #tpu.memory_space<vmem>>, %arg4: memref<40x512xf32, #tpu.memory_space<vmem>>, %arg5: memref<512x256xf32, #tpu.memory_space<vmem>>, %arg6: memref<1x256xf32, #tpu.memory_space<vmem>>, %arg7: memref<1x1x256xf32, #tpu.memory_space<vmem>>) attributes {dimension_semantics = [#tpu.dimension_semantics<parallel>], iteration_bounds = array<i64: 1>, scalar_prefetch = 0 : i64, scratch_operands = 0 : i64, tpu.core_type = #tpu.core_type<tc>, window_params = [{transform_indices = @transform_0, window_bounds = array<i64: 1, 16, 256>}, {pipeline_mode = #tpu.pipeline_mode<synchronous>, transform_indices = @transform_1, window_bounds = array<i64: 40, 16>}, {pipeline_mode = #tpu.pipeline_mode<synchronous>, transform_indices = @transform_2, window_bounds = array<i64: 256, 256>}, {pipeline_mode = #tpu.pipeline_mode<synchronous>, transform_indices = @transform_3, window_bounds = array<i64: 40, 512>}, {pipeline_mode = #tpu.pipeline_mode<synchronous>, transform_indices = @transform_4, window_bounds = array<i64: 512, 256>}, {pipeline_mode = #tpu.pipeline_mode<synchronous>, transform_indices = @transform_5, window_bounds = array<i64: 1, 256>}, {transform_indices = @transform_6, window_bounds = array<i64: 1, 1, 256>}]} {
    %c0 = arith.constant 0 : index
    %c0_0 = arith.constant 0 : index
    %0 = vector.load %arg2[%c0, %c0_0] : memref<40x16xbf16, #tpu.memory_space<vmem>>, vector<40x16xbf16>
    %c0_1 = arith.constant 0 : index
    %c0_2 = arith.constant 0 : index
    %c0_3 = arith.constant 0 : index
    %1 = vector.load %arg1[%c0_1, %c0_2, %c0_3] : memref<1x16x256xbf16, #tpu.memory_space<vmem>>, vector<1x16x256xbf16>
    %2 = vector.shape_cast %1 : vector<1x16x256xbf16> to vector<16x256xbf16>
    %cst = arith.constant dense<0.000000e+00> : vector<40x256xf32>
    %3 = tpu.matmul %0, %2, %cst {dimension_numbers = #tpu.dot_dimension_numbers<[1], [0], [0], [1], [0, 0, 1, 1], [], []>} : vector<40x16xbf16>, vector<16x256xbf16>, vector<40x256xf32> -> vector<40x256xf32>
    %4 = arith.mulf %3, %3 : vector<40x256xf32>
    %5 = arith.truncf %4 : vector<40x256xf32> to vector<40x256xbf16>
    %c0_4 = arith.constant 0 : index
    %c0_5 = arith.constant 0 : index
    %6 = vector.load %arg3[%c0_4, %c0_5] : memref<256x256xbf16, #tpu.memory_space<vmem>>, vector<256x256xbf16>
    %cst_6 = arith.constant dense<0.000000e+00> : vector<40x256xf32>
    %7 = tpu.matmul %5, %6, %cst_6 {dimension_numbers = #tpu.dot_dimension_numbers<[1], [0], [0], [1], [0, 0, 1, 1], [], []>} : vector<40x256xbf16>, vector<256x256xbf16>, vector<40x256xf32> -> vector<40x256xf32>
    %cst_7 = arith.constant 7.000000e-06 : f32
    %8 = vector.broadcast %cst_7 : f32 to vector<40x256xf32>
    %9 = arith.maximumf %7, %8 : vector<40x256xf32>
    %10 = math.log %9 : vector<40x256xf32>
    %11 = tpu.concatenate %10, %10 in 1 : vector<40x256xf32>, vector<40x256xf32> -> vector<40x512xf32>
    %c0_8 = arith.constant 0 : index
    %c0_9 = arith.constant 0 : index
    %12 = vector.load %arg4[%c0_8, %c0_9] : memref<40x512xf32, #tpu.memory_space<vmem>>, vector<40x512xf32>
    %13 = arith.mulf %11, %12 : vector<40x512xf32>
    %c0_10 = arith.constant 0 : index
    %c0_11 = arith.constant 0 : index
    %14 = vector.load %arg5[%c0_10, %c0_11] : memref<512x256xf32, #tpu.memory_space<vmem>>, vector<512x256xf32>
    %cst_12 = arith.constant dense<0.000000e+00> : vector<40x256xf32>
    %15 = tpu.matmul %13, %14, %cst_12 {dimension_numbers = #tpu.dot_dimension_numbers<[1], [0], [0], [1], [0, 0, 1, 1], [], []>} : vector<40x512xf32>, vector<512x256xf32>, vector<40x256xf32> -> vector<40x256xf32>
    %cst_13 = arith.constant dense<0.000000e+00> : vector<256xf32>
    %16 = vector.multi_reduction <add>, %15, %cst_13 [0] : vector<40x256xf32> to vector<256xf32>
    %17 = vector.shape_cast %16 : vector<256xf32> to vector<1x256xf32>
    %c0_14 = arith.constant 0 : index
    %c0_15 = arith.constant 0 : index
    %18 = vector.load %arg6[%c0_14, %c0_15] : memref<1x256xf32, #tpu.memory_space<vmem>>, vector<1x256xf32>
    %19 = arith.addf %17, %18 : vector<1x256xf32>
    %20 = vector.extract_strided_slice %19 {offsets = [0, 0], sizes = [1, 128], strides = [1, 1]} : vector<1x256xf32> to vector<1x128xf32>
    %cst_16 = arith.constant dense<0xFF800000> : vector<1xf32>
    %21 = vector.multi_reduction <maximumf>, %20, %cst_16 [1] : vector<1x128xf32> to vector<1xf32>
    %22 = vector.shape_cast %21 : vector<1xf32> to vector<1x1xf32>
    %23 = vector.broadcast %22 : vector<1x1xf32> to vector<1x128xf32>
    %24 = arith.subf %20, %23 : vector<1x128xf32>
    %25 = math.exp %24 : vector<1x128xf32>
    %cst_17 = arith.constant dense<0.000000e+00> : vector<1xf32>
    %26 = vector.multi_reduction <add>, %25, %cst_17 [1] : vector<1x128xf32> to vector<1xf32>
    %27 = vector.shape_cast %26 : vector<1xf32> to vector<1x1xf32>
    %28 = math.log %27 : vector<1x1xf32>
    %29 = arith.addf %22, %28 : vector<1x1xf32>
    %30 = vector.broadcast %29 : vector<1x1xf32> to vector<1x128xf32>
    %31 = arith.subf %20, %30 : vector<1x128xf32>
    %c0_18 = arith.constant 0 : index
    %c0_19 = arith.constant 0 : index
    %c0_20 = arith.constant 0 : index
    %32 = vector.load %arg7[%c0_18, %c0_19, %c0_20] : memref<1x1x256xf32, #tpu.memory_space<vmem>>, vector<1x1x128xf32>
    %33 = vector.shape_cast %32 : vector<1x1x128xf32> to vector<1x128xf32>
    %34 = vector.shape_cast %31 : vector<1x128xf32> to vector<1x1x128xf32>
    tpu.vector_store %arg7[%c0_18, %c0_19, %c0_20], %34 {strides = array<i32>} : memref<1x1x256xf32, #tpu.memory_space<vmem>>, vector<1x1x128xf32>,
    %35 = vector.extract_strided_slice %19 {offsets = [0, 128], sizes = [1, 128], strides = [1, 1]} : vector<1x256xf32> to vector<1x128xf32>
    %cst_21 = arith.constant dense<0xFF800000> : vector<1xf32>
    %36 = vector.multi_reduction <maximumf>, %35, %cst_21 [1] : vector<1x128xf32> to vector<1xf32>
    %37 = vector.shape_cast %36 : vector<1xf32> to vector<1x1xf32>
    %38 = vector.broadcast %37 : vector<1x1xf32> to vector<1x128xf32>
    %39 = arith.subf %35, %38 : vector<1x128xf32>
    %40 = math.exp %39 : vector<1x128xf32>
    %cst_22 = arith.constant dense<0.000000e+00> : vector<1xf32>
    %41 = vector.multi_reduction <add>, %40, %cst_22 [1] : vector<1x128xf32> to vector<1xf32>
    %42 = vector.shape_cast %41 : vector<1xf32> to vector<1x1xf32>
    %43 = math.log %42 : vector<1x1xf32>
    %44 = arith.addf %37, %43 : vector<1x1xf32>
    %45 = vector.broadcast %44 : vector<1x1xf32> to vector<1x128xf32>
    %46 = arith.subf %35, %45 : vector<1x128xf32>
    %c0_23 = arith.constant 0 : index
    %c0_24 = arith.constant 0 : index
    %c128 = arith.constant 128 : index
    %47 = vector.load %arg7[%c0_23, %c0_24, %c128] : memref<1x1x256xf32, #tpu.memory_space<vmem>>, vector<1x1x128xf32>
    %48 = vector.shape_cast %47 : vector<1x1x128xf32> to vector<1x128xf32>
    %49 = vector.shape_cast %46 : vector<1x128xf32> to vector<1x1x128xf32>
    tpu.vector_store %arg7[%c0_23, %c0_24, %c128], %49 {strides = array<i32>} : memref<1x1x256xf32, #tpu.memory_space<vmem>>, vector<1x1x128xf32>,
    return
  }
  func.func @transform_0(%arg0: i32) -> (i32, i32, i32) {
    %c0_i32 = arith.constant 0 : i32
    %c0_i32_0 = arith.constant 0 : i32
    %c0_i32_1 = arith.constant 0 : i32
    return %arg0, %c0_i32, %c0_i32_0 : i32, i32, i32
  }
  func.func @transform_1(%arg0: i32) -> (i32, i32) {
    %c0_i32 = arith.constant 0 : i32
    %c0_i32_0 = arith.constant 0 : i32
    %c0_i32_1 = arith.constant 0 : i32
    return %c0_i32, %c0_i32_0 : i32, i32
  }
  func.func @transform_2(%arg0: i32) -> (i32, i32) {
    %c0_i32 = arith.constant 0 : i32
    %c0_i32_0 = arith.constant 0 : i32
    %c0_i32_1 = arith.constant 0 : i32
    return %c0_i32, %c0_i32_0 : i32, i32
  }
  func.func @transform_3(%arg0: i32) -> (i32, i32) {
    %c0_i32 = arith.constant 0 : i32
    %c0_i32_0 = arith.constant 0 : i32
    %c0_i32_1 = arith.constant 0 : i32
    return %c0_i32, %c0_i32_0 : i32, i32
  }
  func.func @transform_4(%arg0: i32) -> (i32, i32) {
    %c0_i32 = arith.constant 0 : i32
    %c0_i32_0 = arith.constant 0 : i32
    %c0_i32_1 = arith.constant 0 : i32
    return %c0_i32, %c0_i32_0 : i32, i32
  }
  func.func @transform_5(%arg0: i32) -> (i32, i32) {
    %c0_i32 = arith.constant 0 : i32
    %c0_i32_0 = arith.constant 0 : i32
    %c0_i32_1 = arith.constant 0 : i32
    return %c0_i32, %c0_i32_0 : i32, i32
  }
  func.func @transform_6(%arg0: i32) -> (i32, i32, i32) {
    %c0_i32 = arith.constant 0 : i32
    %c0_i32_0 = arith.constant 0 : i32
    %c0_i32_1 = arith.constant 0 : i32
    return %arg0, %c0_i32, %c0_i32_0 : i32, i32, i32
  }
}

</mosaic_0001>

<llo_original>
// kernel: tpu_custom_call.1
$region0: #{tpu_custom_call.1}
  #allocation0 [shape = 'u32[]', space=smem, size = 0x4, offset = 0x4, fixed_abs, tag = 'smem constant byte address 0x4 - core index']
  #allocation1 [shape = 'u32[144,128]{1,0:T(1,128)}', space=vmem, size = 0x12000, scoped, tag = 'internal scratch']
  %s0 = inlined_call_operand.vmem [shape: bf16[1,16,256], index: 0, kind: input, shape index: {}]
  %s1 = inlined_call_operand.vmem [shape: bf16[40,16], index: 1, kind: input, shape index: {}]
  %s2 = inlined_call_operand.hbm [shape: bf16[256,256], index: 2, kind: input, shape index: {}]
  %s3 = inlined_call_operand.hbm [shape: f32[40,512], index: 3, kind: input, shape index: {}]
  %s4 = inlined_call_operand.hbm [shape: f32[512,256], index: 4, kind: input, shape index: {}]
  %s5 = inlined_call_operand.vmem [shape: f32[1,256], index: 5, kind: input, shape index: {}]
  %s6 = inlined_call_operand.hbm [shape: f32[1,1,256], index: 6, kind: output, shape index: {}]
  %s7 = sld [smem:[#allocation0]]
  $region46: #{tpu_custom_call.1} parent=0
    _
  %s9 = ssub.s32 1, %s7
  %s10 = scalar_select 0, %s9, %s7
  $region1: #{tpu_custom_call.1} parent=0
    #allocation2 [shape = 'u8[131072]{0}', space=vmem, size = 0x20000, scoped, tag = 'input window, operand 2, single buffered']
    #allocation3 [shape = 's32[1]{0}', space=sflag, size = 0x4, scoped, tag = 'scoped memory for tpu_custom_call.1']
    #allocation4 [shape = 's32[1]{0}', space=sflag, size = 0x4, scoped, tag = 'scoped memory for tpu_custom_call.1']
    #allocation5 [shape = 'u8[81920]{0}', space=vmem, size = 0x14000, scoped, tag = 'input window, operand 3, single buffered']
    #allocation6 [shape = 's32[1]{0}', space=sflag, size = 0x4, scoped, tag = 'scoped memory for tpu_custom_call.1']
    #allocation7 [shape = 'u8[524288]{0}', space=vmem, size = 0x80000, scoped, tag = 'input window, operand 4, single buffered']
    #allocation8 [shape = 'u8[1024]{0}', space=vmem, size = 0x400, scoped, tag = 'output window, operand 0, single buffered']
    %11 = vsyncpa [#allocation3], 0
    %12 = vsyncpa [#allocation6], 0
    %13 = vsyncpa [#allocation4], 0
    // Predicated region
    $region2: #{tpu_custom_call.1} parent=1 // pred_check
      _
    $region3: #{tpu_custom_call.1} parent=1 // pred_check_branch
      %15 = sbr.rel (0) target = $region5
    $region4: #{tpu_custom_call.1} parent=1 // pred_region
      _
    $region5: #{tpu_custom_call.1} parent=1 // pred_fallthru
      _
    // Predicated region
    $region6: #{tpu_custom_call.1} parent=1 // pred_check
      _
    $region7: #{tpu_custom_call.1} parent=1 // pred_check_branch
      %17 = sbr.rel (0) target = $region9
    $region8: #{tpu_custom_call.1} parent=1 // pred_region
      _
    $region9: #{tpu_custom_call.1} parent=1 // pred_fallthru
      _
    // Predicated region
    $region10: #{tpu_custom_call.1} parent=1 // pred_check
      _
    $region11: #{tpu_custom_call.1} parent=1 // pred_check_branch
      %19 = sbr.rel (0) target = $region13
    $region12: #{tpu_custom_call.1} parent=1 // pred_region
      %s21 = ssub.s32 4096, 4096
      %22 = vsyncadd [#allocation3], %s21
      %s23 = sshll.u32 [#allocation2], 4
      %s24 = int_to_ptr.vmem [resolvable:$true] %s23
      %29 = dma.hbm_to_vmem [thread:$0]  %s2, 4096, %s24, [#allocation3], 128, 128, 8
    $region13: #{tpu_custom_call.1} parent=1 // pred_fallthru
      _
    // Predicated region
    $region14: #{tpu_custom_call.1} parent=1 // pred_check
      _
    $region15: #{tpu_custom_call.1} parent=1 // pred_check_branch
      %31 = sbr.rel (0) target = $region17
    $region16: #{tpu_custom_call.1} parent=1 // pred_region
      %s33 = ssub.s32 2560, 2560
      %34 = vsyncadd [#allocation6], %s33
      %s35 = sshll.u32 [#allocation5], 4
      %s36 = int_to_ptr.vmem [resolvable:$true] %s35
      %41 = dma.hbm_to_vmem [thread:$0]  %s3, 2560, %s36, [#allocation6], 512, 512, 32
    $region17: #{tpu_custom_call.1} parent=1 // pred_fallthru
      _
    // Predicated region
    $region18: #{tpu_custom_call.1} parent=1 // pred_check
      _
    $region19: #{tpu_custom_call.1} parent=1 // pred_check_branch
      %43 = sbr.rel (0) target = $region21
    $region20: #{tpu_custom_call.1} parent=1 // pred_region
      %s45 = ssub.s32 16384, 16384
      %46 = vsyncadd [#allocation6], %s45
      %s47 = sshll.u32 [#allocation7], 4
      %s48 = int_to_ptr.vmem [resolvable:$true] %s47
      %53 = dma.hbm_to_vmem [thread:$0]  %s4, 16384, %s48, [#allocation6], 256, 256, 16
    $region21: #{tpu_custom_call.1} parent=1 // pred_fallthru
      _
    // Predicated region
    $region22: #{tpu_custom_call.1} parent=1 // pred_check
      _
    $region23: #{tpu_custom_call.1} parent=1 // pred_check_branch
      %55 = sbr.rel (0) target = $region25
    $region24: #{tpu_custom_call.1} parent=1 // pred_region
      _
    $region25: #{tpu_custom_call.1} parent=1 // pred_fallthru
      _
    // Predicated region
    $region26: #{tpu_custom_call.1} parent=1 // pred_check
      _
    $region27: #{tpu_custom_call.1} parent=1 // pred_check_branch
      %57 = sbr.rel (0) target = $region29
    $region28: #{tpu_custom_call.1} parent=1 // pred_region
      %58 = dma.done [#allocation3], 4096
    $region29: #{tpu_custom_call.1} parent=1 // pred_fallthru
      _
    // Predicated region
    $region30: #{tpu_custom_call.1} parent=1 // pred_check
      _
    $region31: #{tpu_custom_call.1} parent=1 // pred_check_branch
      %60 = sbr.rel (0) target = $region33
    $region32: #{tpu_custom_call.1} parent=1 // pred_region
      %61 = dma.done [#allocation6], 2560
    $region33: #{tpu_custom_call.1} parent=1 // pred_fallthru
      _
    // Predicated region
    $region34: #{tpu_custom_call.1} parent=1 // pred_check
      _
    $region35: #{tpu_custom_call.1} parent=1 // pred_check_branch
      %63 = sbr.rel (0) target = $region37
    $region36: #{tpu_custom_call.1} parent=1 // pred_region
      %64 = dma.done [#allocation6], 16384
    $region37: #{tpu_custom_call.1} parent=1 // pred_fallthru
      _
    %v66 = vld [vmem:[%s1] sm:$0xf]
    %v67 = vld [vmem:[%s1 + $0x4] sm:$0xf]
    %v68 = vld [vmem:[%s1 + $0x8] sm:$0xf]
    %v69 = vld [vmem:[%s1 + $0xc] sm:$0xf]
    %v70 = vld [vmem:[%s1 + $0x10] sm:$0xf]
    %v71 = vld [vmem:[%s0] sm:$0xff]
    %v72 = vld [vmem:[%s0 + $0x8] sm:$0xff]
    %v78 = vunpack.c.l.b16 %v66
    %v79 = vunpack.c.l.b16 %v67
    %v80 = vunpack.c.l.b16 %v68
    %v81 = vunpack.c.l.b16 %v69
    %v82 = vunpack.c.l.b16 %v70
    %v83 = vpack.c.b16 %v79, %v78
    %v84 = vpack.c.b16 %v81, %v80
    %v85 = vpack.c.b16 %v82, %v82
    %v88 = vunpack.c.l.b16 %v71
    %v89 = vunpack.c.h.b16 %v71
    %v90 = vunpack.c.l.b16 %v72
    %v91 = vunpack.c.h.b16 %v72
    %v92 = vpack.c.b16 %v90, %v88
    %v93 = vpack.c.b16 %v91, %v89
    %vm96 = vcmask 130048
    %v98 = vsel %vm96, %v83, 0
    %v101 = vsel %vm96, %v84, 0
    %v104 = vsel %vm96, %v85, 0
    %106 = vmatprep.subr.bf16.mxu0 0
    %107 = vmatpush1.bf16.msra.mxu0 0
    %108 = vmatprep.subr.bf16.mxu0 0
    %109 = vmatpush1.bf16.msra.mxu0 0
    %110 = vmatprep.subr.bf16.mxu0 0
    %111 = vmatpush1.bf16.msra.mxu0 0
    %112 = vmatprep.subr.bf16.mxu0 0
    %113 = vmatpush1.bf16.msra.mxu0 0
    %114 = vmatprep.subr.bf16.mxu0 0
    %115 = vmatpush1.bf16.msra.mxu0 0
    %116 = vmatprep.subr.bf16.mxu0 0
    %117 = vmatpush1.bf16.msra.mxu0 0
    %118 = vmatprep.subr.bf16.mxu0 0
    %119 = vmatpush1.bf16.msra.mxu0 0
    %120 = vmatprep.subr.bf16.mxu0 %v93
    %121 = vmatpush1.bf16.msra.mxu0 %v92
    %122 = vmatprep.subr.bf16.mxu0 0
    %123 = vmatpush2.bf16.msra.mxu0 0
    %124 = vmatprep.subr.bf16.mxu0 0
    %125 = vmatpush2.bf16.msra.mxu0 0
    %126 = vmatprep.subr.bf16.mxu0 0
    %127 = vmatpush2.bf16.msra.mxu0 0
    %128 = vmatprep.subr.bf16.mxu0 0
    %129 = vmatpush2.bf16.msra.mxu0 0
    %130 = vmatprep.subr.bf16.mxu0 0
    %131 = vmatpush2.bf16.msra.mxu0 0
    %132 = vmatprep.subr.bf16.mxu0 0
    %133 = vmatpush2.bf16.msra.mxu0 0
    %134 = vmatprep.subr.bf16.mxu0 0
    %135 = vmatpush2.bf16.msra.mxu0 0
    %136 = vmatprep.subr.bf16.mxu0 0
    %137 = vmatpush2.bf16.msra.mxu0 0
    %138 = vmatprep.mubr.bf16.mxu0 0
    %139 = vmatmul.mubr.bf16.gmra.mxu0 %v98
    %v140 = vpop.f32.mrf.mxu0
    %v141 = vadd.f32 0.0, %v140
    %v142 = vpop.f32.mrf.mxu0
    %v143 = vadd.f32 0.0, %v142
    %v144 = vpop.f32.mrf.mxu0
    %v145 = vadd.f32 0.0, %v144
    %v146 = vpop.f32.mrf.mxu0
    %v147 = vadd.f32 0.0, %v146
    %148 = vmatprep.mubr.bf16.mxu0 0
    %149 = vmatmul.mubr.bf16.gmra.mxu0 %v101
    %v150 = vpop.f32.mrf.mxu0
    %v151 = vadd.f32 0.0, %v150
    %v152 = vpop.f32.mrf.mxu0
    %v153 = vadd.f32 0.0, %v152
    %v154 = vpop.f32.mrf.mxu0
    %v155 = vadd.f32 0.0, %v154
    %v156 = vpop.f32.mrf.mxu0
    %v157 = vadd.f32 0.0, %v156
    %158 = vmatprep.mubr.bf16.mxu0 0
    %159 = vmatmul.mubr.bf16.gmra.mxu0 %v104
    %v160 = vpop.f32.mrf.mxu0
    %v161 = vadd.f32 0.0, %v160
    %v162 = vpop.f32.mrf.mxu0
    %v163 = vadd.f32 0.0, %v162
    %v164 = vpop.f32.mrf.mxu0
    %v165 = vpop.f32.mrf.mxu0
    %166 = vdwg.mxu0
    %v167 = vmul.f32 %v141, %v141
    %v168 = vmul.f32 %v143, %v143
    %v169 = vmul.f32 %v145, %v145
    %v170 = vmul.f32 %v147, %v147
    %v171 = vmul.f32 %v151, %v151
    %v172 = vmul.f32 %v153, %v153
    %v173 = vmul.f32 %v155, %v155
    %v174 = vmul.f32 %v157, %v157
    %v175 = vmul.f32 %v161, %v161
    %v176 = vmul.f32 %v163, %v163
    %v177 = vpack.c.bf16 %v169, %v167
    %v178 = vpack.c.bf16 %v170, %v168
    %v179 = vpack.c.bf16 %v173, %v171
    %v180 = vpack.c.bf16 %v174, %v172
    %v181 = vpack.c.bf16 %v175, %v175
    %v182 = vpack.c.bf16 %v176, %v176
    %v183 = vld [vmem:[#allocation2] sm:$0xff]
    %v184 = vld [vmem:[#allocation2 + $0x8] sm:$0xff]
    %v185 = vld [vmem:[#allocation2 + $0x10] sm:$0xff]
    %v186 = vld [vmem:[#allocation2 + $0x18] sm:$0xff]
    %v187 = vld [vmem:[#allocation2 + $0x20] sm:$0xff]
    %v188 = vld [vmem:[#allocation2 + $0x28] sm:$0xff]
    %v189 = vld [vmem:[#allocation2 + $0x30] sm:$0xff]
    %v190 = vld [vmem:[#allocation2 + $0x38] sm:$0xff]
    %v191 = vld [vmem:[#allocation2 + $0x40] sm:$0xff]
    %v192 = vld [vmem:[#allocation2 + $0x48] sm:$0xff]
    %v193 = vld [vmem:[#allocation2 + $0x50] sm:$0xff]
    %v194 = vld [vmem:[#allocation2 + $0x58] sm:$0xff]
    %v195 = vld [vmem:[#allocation2 + $0x60] sm:$0xff]
    %v196 = vld [vmem:[#allocation2 + $0x68] sm:$0xff]
    %v197 = vld [vmem:[#allocation2 + $0x70] sm:$0xff]
    %v198 = vld [vmem:[#allocation2 + $0x78] sm:$0xff]
    %v199 = vld [vmem:[#allocation2 + $0x80] sm:$0xff]
    %v200 = vld [vmem:[#allocation2 + $0x88] sm:$0xff]
    %v201 = vld [vmem:[#allocation2 + $0x90] sm:$0xff]
    %v202 = vld [vmem:[#allocation2 + $0x98] sm:$0xff]
    %v203 = vld [vmem:[#allocation2 + $0xa0] sm:$0xff]
    %v204 = vld [vmem:[#allocation2 + $0xa8] sm:$0xff]
    %v205 = vld [vmem:[#allocation2 + $0xb0] sm:$0xff]
    %v206 = vld [vmem:[#allocation2 + $0xb8] sm:$0xff]
    %v207 = vld [vmem:[#allocation2 + $0xc0] sm:$0xff]
    %v208 = vld [vmem:[#allocation2 + $0xc8] sm:$0xff]
    %v209 = vld [vmem:[#allocation2 + $0xd0] sm:$0xff]
    %v210 = vld [vmem:[#allocation2 + $0xd8] sm:$0xff]
    %v211 = vld [vmem:[#allocation2 + $0xe0] sm:$0xff]
    %v212 = vld [vmem:[#allocation2 + $0xe8] sm:$0xff]
    %v213 = vld [vmem:[#allocation2 + $0xf0] sm:$0xff]
    %v214 = vld [vmem:[#allocation2 + $0xf8] sm:$0xff]
    %v247 = vunpack.c.l.b16 %v183
    %v248 = vunpack.c.h.b16 %v183
    %v249 = vunpack.c.l.b16 %v184
    %v250 = vunpack.c.h.b16 %v184
    %v251 = vunpack.c.l.b16 %v185
    %v252 = vunpack.c.h.b16 %v185
    %v253 = vunpack.c.l.b16 %v186
    %v254 = vunpack.c.h.b16 %v186
    %v255 = vunpack.c.l.b16 %v187
    %v256 = vunpack.c.h.b16 %v187
    %v257 = vunpack.c.l.b16 %v188
    %v258 = vunpack.c.h.b16 %v188
    %v259 = vunpack.c.l.b16 %v189
    %v260 = vunpack.c.h.b16 %v189
    %v261 = vunpack.c.l.b16 %v190
    %v262 = vunpack.c.h.b16 %v190
    %v263 = vunpack.c.l.b16 %v191
    %v264 = vunpack.c.h.b16 %v191
    %v265 = vunpack.c.l.b16 %v192
    %v266 = vunpack.c.h.b16 %v192
    %v267 = vunpack.c.l.b16 %v193
    %v268 = vunpack.c.h.b16 %v193
    %v269 = vunpack.c.l.b16 %v194
    %v270 = vunpack.c.h.b16 %v194
    %v271 = vunpack.c.l.b16 %v195
    %v272 = vunpack.c.h.b16 %v195
    %v273 = vunpack.c.l.b16 %v196
    %v274 = vunpack.c.h.b16 %v196
    %v275 = vunpack.c.l.b16 %v197
    %v276 = vunpack.c.h.b16 %v197
    %v277 = vunpack.c.l.b16 %v198
    %v278 = vunpack.c.h.b16 %v198
    %v279 = vunpack.c.l.b16 %v199
    %v280 = vunpack.c.h.b16 %v199
    %v281 = vunpack.c.l.b16 %v200
    %v282 = vunpack.c.h.b16 %v200
    %v283 = vunpack.c.l.b16 %v201
    %v284 = vunpack.c.h.b16 %v201
    %v285 = vunpack.c.l.b16 %v202
    %v286 = vunpack.c.h.b16 %v202
    %v287 = vunpack.c.l.b16 %v203
    %v288 = vunpack.c.h.b16 %v203
    %v289 = vunpack.c.l.b16 %v204
    %v290 = vunpack.c.h.b16 %v204
    %v291 = vunpack.c.l.b16 %v205
    %v292 = vunpack.c.h.b16 %v205
    %v293 = vunpack.c.l.b16 %v206
    %v294 = vunpack.c.h.b16 %v206
    %v295 = vunpack.c.l.b16 %v207
    %v296 = vunpack.c.h.b16 %v207
    %v297 = vunpack.c.l.b16 %v208
    %v298 = vunpack.c.h.b16 %v208
    %v299 = vunpack.c.l.b16 %v209
    %v300 = vunpack.c.h.b16 %v209
    %v301 = vunpack.c.l.b16 %v210
    %v302 = vunpack.c.h.b16 %v210
    %v303 = vunpack.c.l.b16 %v211
    %v304 = vunpack.c.h.b16 %v211
    %v305 = vunpack.c.l.b16 %v212
    %v306 = vunpack.c.h.b16 %v212
    %v307 = vunpack.c.l.b16 %v213
    %v308 = vunpack.c.h.b16 %v213
    %v309 = vunpack.c.l.b16 %v214
    %v310 = vunpack.c.h.b16 %v214
    %v311 = vpack.c.b16 %v249, %v247
    %v312 = vpack.c.b16 %v250, %v248
    %v313 = vpack.c.b16 %v253, %v251
    %v314 = vpack.c.b16 %v254, %v252
    %v315 = vpack.c.b16 %v257, %v255
    %v316 = vpack.c.b16 %v258, %v256
    %v317 = vpack.c.b16 %v261, %v259
    %v318 = vpack.c.b16 %v262, %v260
    %v319 = vpack.c.b16 %v265, %v263
    %v320 = vpack.c.b16 %v266, %v264
    %v321 = vpack.c.b16 %v269, %v267
    %v322 = vpack.c.b16 %v270, %v268
    %v323 = vpack.c.b16 %v273, %v271
    %v324 = vpack.c.b16 %v274, %v272
    %v325 = vpack.c.b16 %v277, %v275
    %v326 = vpack.c.b16 %v278, %v276
    %v327 = vpack.c.b16 %v281, %v279
    %v328 = vpack.c.b16 %v282, %v280
    %v329 = vpack.c.b16 %v285, %v283
    %v330 = vpack.c.b16 %v286, %v284
    %v331 = vpack.c.b16 %v289, %v287
    %v332 = vpack.c.b16 %v290, %v288
    %v333 = vpack.c.b16 %v293, %v291
    %v334 = vpack.c.b16 %v294, %v292
    %v335 = vpack.c.b16 %v297, %v295
    %v336 = vpack.c.b16 %v298, %v296
    %v337 = vpack.c.b16 %v301, %v299
    %v338 = vpack.c.b16 %v302, %v300
    %v339 = vpack.c.b16 %v305, %v303
    %v340 = vpack.c.b16 %v306, %v304
    %v341 = vpack.c.b16 %v309, %v307
    %v342 = vpack.c.b16 %v310, %v308
    %375 = vmatprep.subr.bf16.mxu0 %v326
    %376 = vmatpush1.bf16.msra.mxu0 %v325
    %377 = vmatprep.subr.bf16.mxu0 %v324
    %378 = vmatpush1.bf16.msra.mxu0 %v323
    %379 = vmatprep.subr.bf16.mxu0 %v322
    %380 = vmatpush1.bf16.msra.mxu0 %v321
    %381 = vmatprep.subr.bf16.mxu0 %v320
    %382 = vmatpush1.bf16.msra.mxu0 %v319
    %383 = vmatprep.subr.bf16.mxu0 %v318
    %384 = vmatpush1.bf16.msra.mxu0 %v317
    %385 = vmatprep.subr.bf16.mxu0 %v316
    %386 = vmatpush1.bf16.msra.mxu0 %v315
    %387 = vmatprep.subr.bf16.mxu0 %v314
    %388 = vmatpush1.bf16.msra.mxu0 %v313
    %389 = vmatprep.subr.bf16.mxu0 %v312
    %390 = vmatpush1.bf16.msra.mxu0 %v311
    %391 = vmatprep.subr.bf16.mxu0 %v342
    %392 = vmatpush2.bf16.msra.mxu0 %v341
    %393 = vmatprep.subr.bf16.mxu0 %v340
    %394 = vmatpush2.bf16.msra.mxu0 %v339
    %395 = vmatprep.subr.bf16.mxu0 %v338
    %396 = vmatpush2.bf16.msra.mxu0 %v337
    %397 = vmatprep.subr.bf16.mxu0 %v336
    %398 = vmatpush2.bf16.msra.mxu0 %v335
    %399 = vmatprep.subr.bf16.mxu0 %v334
    %400 = vmatpush2.bf16.msra.mxu0 %v333
    %401 = vmatprep.subr.bf16.mxu0 %v332
    %402 = vmatpush2.bf16.msra.mxu0 %v331
    %403 = vmatprep.subr.bf16.mxu0 %v330
    %404 = vmatpush2.bf16.msra.mxu0 %v329
    %405 = vmatprep.subr.bf16.mxu0 %v328
    %406 = vmatpush2.bf16.msra.mxu0 %v327
    %407 = vmatprep.mubr.bf16.mxu0 %v178
    %408 = vmatmul.mubr.bf16.gmra.mxu0 %v177
    %v409 = vpop.f32.mrf.mxu0
    %v410 = vadd.f32 0.0, %v409
    %v411 = vpop.f32.mrf.mxu0
    %v412 = vadd.f32 0.0, %v411
    %v413 = vpop.f32.mrf.mxu0
    %v414 = vadd.f32 0.0, %v413
    %v415 = vpop.f32.mrf.mxu0
    %v416 = vadd.f32 0.0, %v415
    %417 = vmatprep.mubr.bf16.mxu0 %v180
    %418 = vmatmul.mubr.bf16.gmra.mxu0 %v179
    %v419 = vpop.f32.mrf.mxu0
    %v420 = vadd.f32 0.0, %v419
    %v421 = vpop.f32.mrf.mxu0
    %v422 = vadd.f32 0.0, %v421
    %v423 = vpop.f32.mrf.mxu0
    %v424 = vadd.f32 0.0, %v423
    %v425 = vpop.f32.mrf.mxu0
    %v426 = vadd.f32 0.0, %v425
    %427 = vmatprep.mubr.bf16.mxu0 %v182
    %428 = vmatmul.mubr.bf16.gmra.mxu0 %v181
    %v429 = vpop.f32.mrf.mxu0
    %v430 = vadd.f32 0.0, %v429
    %v431 = vpop.f32.mrf.mxu0
    %v432 = vadd.f32 0.0, %v431
    %v433 = vpop.f32.mrf.mxu0
    %v434 = vpop.f32.mrf.mxu0
    %435 = vdwg.mxu0
    %v436 = vmax.f32 %v410, 7e-06
    %v437 = vmax.f32 %v412, 7e-06
    %v438 = vmax.f32 %v414, 7e-06
    %v439 = vmax.f32 %v416, 7e-06
    %v440 = vmax.f32 %v420, 7e-06
    %v441 = vmax.f32 %v422, 7e-06
    %v442 = vmax.f32 %v424, 7e-06
    %v443 = vmax.f32 %v426, 7e-06
    %v444 = vmax.f32 %v430, 7e-06
    %v445 = vmax.f32 %v432, 7e-06
    %v446 = vlog2.pop %v436
    %v447 = vmul.f32 %v446, 0.6931472
    %v448 = vlog2.pop %v437
    %v449 = vmul.f32 %v448, 0.6931472
    %v450 = vlog2.pop %v438
    %v451 = vmul.f32 %v450, 0.6931472
    %v452 = vlog2.pop %v439
    %v453 = vmul.f32 %v452, 0.6931472
    %v454 = vlog2.pop %v440
    %v455 = vmul.f32 %v454, 0.6931472
    %v456 = vlog2.pop %v441
    %v457 = vmul.f32 %v456, 0.6931472
    %v458 = vlog2.pop %v442
    %v459 = vmul.f32 %v458, 0.6931472
    %v460 = vlog2.pop %v443
    %v461 = vmul.f32 %v460, 0.6931472
    %v462 = vlog2.pop %v444
    %v463 = vmul.f32 %v462, 0.6931472
    %v464 = vlog2.pop %v445
    %v465 = vmul.f32 %v464, 0.6931472
    %v466 = vld [vmem:[#allocation5] sm:$0xff]
    %v467 = vld [vmem:[#allocation5 + $0x8] sm:$0xff]
    %v468 = vld [vmem:[#allocation5 + $0x10] sm:$0xff]
    %v469 = vld [vmem:[#allocation5 + $0x18] sm:$0xff]
    %v470 = vld [vmem:[#allocation5 + $0x20] sm:$0xff]
    %v471 = vld [vmem:[#allocation5 + $0x28] sm:$0xff]
    %v472 = vld [vmem:[#allocation5 + $0x30] sm:$0xff]
    %v473 = vld [vmem:[#allocation5 + $0x38] sm:$0xff]
    %v474 = vld [vmem:[#allocation5 + $0x40] sm:$0xff]
    %v475 = vld [vmem:[#allocation5 + $0x48] sm:$0xff]
    %v476 = vld [vmem:[#allocation5 + $0x50] sm:$0xff]
    %v477 = vld [vmem:[#allocation5 + $0x58] sm:$0xff]
    %v478 = vld [vmem:[#allocation5 + $0x60] sm:$0xff]
    %v479 = vld [vmem:[#allocation5 + $0x68] sm:$0xff]
    %v480 = vld [vmem:[#allocation5 + $0x70] sm:$0xff]
    %v481 = vld [vmem:[#allocation5 + $0x78] sm:$0xff]
    %v482 = vld [vmem:[#allocation5 + $0x80] sm:$0xff]
    %v483 = vld [vmem:[#allocation5 + $0x88] sm:$0xff]
    %v484 = vld [vmem:[#allocation5 + $0x90] sm:$0xff]
    %v485 = vld [vmem:[#allocation5 + $0x98] sm:$0xff]
    %v486 = vmul.f32 %v447, %v466
    %v487 = vmul.f32 %v449, %v467
    %v488 = vmul.f32 %v447, %v468
    %v489 = vmul.f32 %v449, %v469
    %v490 = vmul.f32 %v451, %v470
    %v491 = vmul.f32 %v453, %v471
    %v492 = vmul.f32 %v451, %v472
    %v493 = vmul.f32 %v453, %v473
    %v494 = vmul.f32 %v455, %v474
    %v495 = vmul.f32 %v457, %v475
    %v496 = vmul.f32 %v455, %v476
    %v497 = vmul.f32 %v457, %v477
    %v498 = vmul.f32 %v459, %v478
    %v499 = vmul.f32 %v461, %v479
    %v500 = vmul.f32 %v459, %v480
    %v501 = vmul.f32 %v461, %v481
    %v502 = vmul.f32 %v463, %v482
    %v503 = vmul.f32 %v465, %v483
    %v504 = vmul.f32 %v463, %v484
    %v505 = vmul.f32 %v465, %v485
    %v506 = vld [vmem:[#allocation7] sm:$0xff]
    %v507 = vld [vmem:[#allocation7 + $0x8] sm:$0xff]
    %v508 = vld [vmem:[#allocation7 + $0x10] sm:$0xff]
    %v509 = vld [vmem:[#allocation7 + $0x18] sm:$0xff]
    %v510 = vld [vmem:[#allocation7 + $0x20] sm:$0xff]
    %v511 = vld [vmem:[#allocation7 + $0x28] sm:$0xff]
    %v512 = vld [vmem:[#allocation7 + $0x30] sm:$0xff]
    %v513 = vld [vmem:[#allocation7 + $0x38] sm:$0xff]
    %v514 = vld [vmem:[#allocation7 + $0x40] sm:$0xff]
    %v515 = vld [vmem:[#allocation7 + $0x48] sm:$0xff]
    %v516 = vld [vmem:[#allocation7 + $0x50] sm:$0xff]
    %v517 = vld [vmem:[#allocation7 + $0x58] sm:$0xff]
    %v518 = vld [vmem:[#allocation7 + $0x60] sm:$0xff]
    %v519 = vld [vmem:[#allocation7 + $0x68] sm:$0xff]
    %v520 = vld [vmem:[#allocation7 + $0x70] sm:$0xff]
    %v521 = vld [vmem:[#allocation7 + $0x78] sm:$0xff]
    %v522 = vld [vmem:[#allocation7 + $0x80] sm:$0xff]
    %v523 = vld [vmem:[#allocation7 + $0x88] sm:$0xff]
    %v524 = vld [vmem:[#allocation7 + $0x90] sm:$0xff]
    %v525 = vld [vmem:[#allocation7 + $0x98] sm:$0xff]
    %v526 = vld [vmem:[#allocation7 + $0xa0] sm:$0xff]
    %v527 = vld [vmem:[#allocation7 + $0xa8] sm:$0xff]
    %v528 = vld [vmem:[#allocation7 + $0xb0] sm:$0xff]
    %v529 = vld [vmem:[#allocation7 + $0xb8] sm:$0xff]
    %v530 = vld [vmem:[#allocation7 + $0xc0] sm:$0xff]
    %v531 = vld [vmem:[#allocation7 + $0xc8] sm:$0xff]
    %v532 = vld [vmem:[#allocation7 + $0xd0] sm:$0xff]
    %v533 = vld [vmem:[#allocation7 + $0xd8] sm:$0xff]
    %v534 = vld [vmem:[#allocation7 + $0xe0] sm:$0xff]
    %v535 = vld [vmem:[#allocation7 + $0xe8] sm:$0xff]
    %v536 = vld [vmem:[#allocation7 + $0xf0] sm:$0xff]
    %v537 = vld [vmem:[#allocation7 + $0xf8] sm:$0xff]
    %v538 = vld [vmem:[#allocation7 + $0x100] sm:$0xff]
    %v539 = vld [vmem:[#allocation7 + $0x108] sm:$0xff]
    %v540 = vld [vmem:[#allocation7 + $0x110] sm:$0xff]
    %v541 = vld [vmem:[#allocation7 + $0x118] sm:$0xff]
    %v542 = vld [vmem:[#allocation7 + $0x120] sm:$0xff]
    %v543 = vld [vmem:[#allocation7 + $0x128] sm:$0xff]
    %v544 = vld [vmem:[#allocation7 + $0x130] sm:$0xff]
    %v545 = vld [vmem:[#allocation7 + $0x138] sm:$0xff]
    %v546 = vld [vmem:[#allocation7 + $0x140] sm:$0xff]
    %v547 = vld [vmem:[#allocation7 + $0x148] sm:$0xff]
    %v548 = vld [vmem:[#allocation7 + $0x150] sm:$0xff]
    %v549 = vld [vmem:[#allocation7 + $0x158] sm:$0xff]
    %v550 = vld [vmem:[#allocation7 + $0x160] sm:$0xff]
    %v551 = vld [vmem:[#allocation7 + $0x168] sm:$0xff]
    %v552 = vld [vmem:[#allocation7 + $0x170] sm:$0xff]
    %v553 = vld [vmem:[#allocation7 + $0x178] sm:$0xff]
    %v554 = vld [vmem:[#allocation7 + $0x180] sm:$0xff]
    %v555 = vld [vmem:[#allocation7 + $0x188] sm:$0xff]
    %v556 = vld [vmem:[#allocation7 + $0x190] sm:$0xff]
    %v557 = vld [vmem:[#allocation7 + $0x198] sm:$0xff]
    %v558 = vld [vmem:[#allocation7 + $0x1a0] sm:$0xff]
    %v559 = vld [vmem:[#allocation7 + $0x1a8] sm:$0xff]
    %v560 = vld [vmem:[#allocation7 + $0x1b0] sm:$0xff]
    %v561 = vld [vmem:[#allocation7 + $0x1b8] sm:$0xff]
    %v562 = vld [vmem:[#allocation7 + $0x1c0] sm:$0xff]
    %v563 = vld [vmem:[#allocation7 + $0x1c8] sm:$0xff]
    %v564 = vld [vmem:[#allocation7 + $0x1d0] sm:$0xff]
    %v565 = vld [vmem:[#allocation7 + $0x1d8] sm:$0xff]
    %v566 = vld [vmem:[#allocation7 + $0x1e0] sm:$0xff]
    %v567 = vld [vmem:[#allocation7 + $0x1e8] sm:$0xff]
    %v568 = vld [vmem:[#allocation7 + $0x1f0] sm:$0xff]
    %v569 = vld [vmem:[#allocation7 + $0x1f8] sm:$0xff]
    %v570 = vld [vmem:[#allocation7 + $0x200] sm:$0xff]
    %v571 = vld [vmem:[#allocation7 + $0x208] sm:$0xff]
    %v572 = vld [vmem:[#allocation7 + $0x210] sm:$0xff]
    %v573 = vld [vmem:[#allocation7 + $0x218] sm:$0xff]
    %v574 = vld [vmem:[#allocation7 + $0x220] sm:$0xff]
    %v575 = vld [vmem:[#allocation7 + $0x228] sm:$0xff]
    %v576 = vld [vmem:[#allocation7 + $0x230] sm:$0xff]
    %v577 = vld [vmem:[#allocation7 + $0x238] sm:$0xff]
    %v578 = vld [vmem:[#allocation7 + $0x240] sm:$0xff]
    %v579 = vld [vmem:[#allocation7 + $0x248] sm:$0xff]
    %v580 = vld [vmem:[#allocation7 + $0x250] sm:$0xff]
    %v581 = vld [vmem:[#allocation7 + $0x258] sm:$0xff]
    %v582 = vld [vmem:[#allocation7 + $0x260] sm:$0xff]
    %v583 = vld [vmem:[#allocation7 + $0x268] sm:$0xff]
    %v584 = vld [vmem:[#allocation7 + $0x270] sm:$0xff]
    %v585 = vld [vmem:[#allocation7 + $0x278] sm:$0xff]
    %v586 = vld [vmem:[#allocation7 + $0x280] sm:$0xff]
    %v587 = vld [vmem:[#allocation7 + $0x288] sm:$0xff]
    %v588 = vld [vmem:[#allocation7 + $0x290] sm:$0xff]
    %v589 = vld [vmem:[#allocation7 + $0x298] sm:$0xff]
    %v590 = vld [vmem:[#allocation7 + $0x2a0] sm:$0xff]
    %v591 = vld [vmem:[#allocation7 + $0x2a8] sm:$0xff]
    %v592 = vld [vmem:[#allocation7 + $0x2b0] sm:$0xff]
    %v593 = vld [vmem:[#allocation7 + $0x2b8] sm:$0xff]
    %v594 = vld [vmem:[#allocation7 + $0x2c0] sm:$0xff]
    %v595 = vld [vmem:[#allocation7 + $0x2c8] sm:$0xff]
    %v596 = vld [vmem:[#allocation7 + $0x2d0] sm:$0xff]
    %v597 = vld [vmem:[#allocation7 + $0x2d8] sm:$0xff]
    %v598 = vld [vmem:[#allocation7 + $0x2e0] sm:$0xff]
    %v599 = vld [vmem:[#allocation7 + $0x2e8] sm:$0xff]
    %v600 = vld [vmem:[#allocation7 + $0x2f0] sm:$0xff]
    %v601 = vld [vmem:[#allocation7 + $0x2f8] sm:$0xff]
    %v602 = vld [vmem:[#allocation7 + $0x300] sm:$0xff]
    %v603 = vld [vmem:[#allocation7 + $0x308] sm:$0xff]
    %v604 = vld [vmem:[#allocation7 + $0x310] sm:$0xff]
    %v605 = vld [vmem:[#allocation7 + $0x318] sm:$0xff]
    %v606 = vld [vmem:[#allocation7 + $0x320] sm:$0xff]
    %v607 = vld [vmem:[#allocation7 + $0x328] sm:$0xff]
    %v608 = vld [vmem:[#allocation7 + $0x330] sm:$0xff]
    %v609 = vld [vmem:[#allocation7 + $0x338] sm:$0xff]
    %v610 = vld [vmem:[#allocation7 + $0x340] sm:$0xff]
    %v611 = vld [vmem:[#allocation7 + $0x348] sm:$0xff]
    %v612 = vld [vmem:[#allocation7 + $0x350] sm:$0xff]
    %v613 = vld [vmem:[#allocation7 + $0x358] sm:$0xff]
    %v614 = vld [vmem:[#allocation7 + $0x360] sm:$0xff]
    %v615 = vld [vmem:[#allocation7 + $0x368] sm:$0xff]
    %v616 = vld [vmem:[#allocation7 + $0x370] sm:$0xff]
    %v617 = vld [vmem:[#allocation7 + $0x378] sm:$0xff]
    %v618 = vld [vmem:[#allocation7 + $0x380] sm:$0xff]
    %v619 = vld [vmem:[#allocation7 + $0x388] sm:$0xff]
    %v620 = vld [vmem:[#allocation7 + $0x390] sm:$0xff]
    %v621 = vld [vmem:[#allocation7 + $0x398] sm:$0xff]
    %v622 = vld [vmem:[#allocation7 + $0x3a0] sm:$0xff]
    %v623 = vld [vmem:[#allocation7 + $0x3a8] sm:$0xff]
    %v624 = vld [vmem:[#allocation7 + $0x3b0] sm:$0xff]
    %v625 = vld [vmem:[#allocation7 + $0x3b8] sm:$0xff]
    %v626 = vld [vmem:[#allocation7 + $0x3c0] sm:$0xff]
    %v627 = vld [vmem:[#allocation7 + $0x3c8] sm:$0xff]
    %v628 = vld [vmem:[#allocation7 + $0x3d0] sm:$0xff]
    %v629 = vld [vmem:[#allocation7 + $0x3d8] sm:$0xff]
    %v630 = vld [vmem:[#allocation7 + $0x3e0] sm:$0xff]
    %v631 = vld [vmem:[#allocation7 + $0x3e8] sm:$0xff]
    %v632 = vld [vmem:[#allocation7 + $0x3f0] sm:$0xff]
    %v633 = vld [vmem:[#allocation7 + $0x3f8] sm:$0xff]
    %634 = vmatprep.subr.mxu0 %v537
    %635 = vmatpush1.msra.mxu0 %v536
    %636 = vmatprep.subr.mxu0 %v535
    %637 = vmatpush1.msra.mxu0 %v534
    %638 = vmatprep.subr.mxu0 %v533
    %639 = vmatpush1.msra.mxu0 %v532
    %640 = vmatprep.subr.mxu0 %v531
    %641 = vmatpush1.msra.mxu0 %v530
    %642 = vmatprep.subr.mxu0 %v529
    %643 = vmatpush1.msra.mxu0 %v528
    %644 = vmatprep.subr.mxu0 %v527
    %645 = vmatpush1.msra.mxu0 %v526
    %646 = vmatprep.subr.mxu0 %v525
    %647 = vmatpush1.msra.mxu0 %v524
    %648 = vmatprep.subr.mxu0 %v523
    %649 = vmatpush1.msra.mxu0 %v522
    %650 = vmatprep.subr.mxu0 %v521
    %651 = vmatpush1.msra.mxu0 %v520
    %652 = vmatprep.subr.mxu0 %v519
    %653 = vmatpush1.msra.mxu0 %v518
    %654 = vmatprep.subr.mxu0 %v517
    %655 = vmatpush1.msra.mxu0 %v516
    %656 = vmatprep.subr.mxu0 %v515
    %657 = vmatpush1.msra.mxu0 %v514
    %658 = vmatprep.subr.mxu0 %v513
    %659 = vmatpush1.msra.mxu0 %v512
    %660 = vmatprep.subr.mxu0 %v511
    %661 = vmatpush1.msra.mxu0 %v510
    %662 = vmatprep.subr.mxu0 %v509
    %663 = vmatpush1.msra.mxu0 %v508
    %664 = vmatprep.subr.mxu0 %v507
    %665 = vmatpush1.msra.mxu0 %v506
    %666 = vmatprep.subr.mxu0 %v569
    %667 = vmatpush2.msra.mxu0 %v568
    %668 = vmatprep.subr.mxu0 %v567
    %669 = vmatpush2.msra.mxu0 %v566
    %670 = vmatprep.subr.mxu0 %v565
    %671 = vmatpush2.msra.mxu0 %v564
    %672 = vmatprep.subr.mxu0 %v563
    %673 = vmatpush2.msra.mxu0 %v562
    %674 = vmatprep.subr.mxu0 %v561
    %675 = vmatpush2.msra.mxu0 %v560
    %676 = vmatprep.subr.mxu0 %v559
    %677 = vmatpush2.msra.mxu0 %v558
    %678 = vmatprep.subr.mxu0 %v557
    %679 = vmatpush2.msra.mxu0 %v556
    %680 = vmatprep.subr.mxu0 %v555
    %681 = vmatpush2.msra.mxu0 %v554
    %682 = vmatprep.subr.mxu0 %v553
    %683 = vmatpush2.msra.mxu0 %v552
    %684 = vmatprep.subr.mxu0 %v551
    %685 = vmatpush2.msra.mxu0 %v550
    %686 = vmatprep.subr.mxu0 %v549
    %687 = vmatpush2.msra.mxu0 %v548
    %688 = vmatprep.subr.mxu0 %v547
    %689 = vmatpush2.msra.mxu0 %v546
    %690 = vmatprep.subr.mxu0 %v545
    %691 = vmatpush2.msra.mxu0 %v544
    %692 = vmatprep.subr.mxu0 %v543
    %693 = vmatpush2.msra.mxu0 %v542
    %694 = vmatprep.subr.mxu0 %v541
    %695 = vmatpush2.msra.mxu0 %v540
    %696 = vmatprep.subr.mxu0 %v539
    %697 = vmatpush2.msra.mxu0 %v538
    %698 = vmatprep.mubr.f32.mxu0 %v487
    %699 = vmatmul.mubr.f32.gmra.mxu0 %v486
    %v700 = vpop.f32.mrf.mxu0
    %v701 = vadd.f32 0.0, %v700
    %v702 = vpop.f32.mrf.mxu0
    %v703 = vadd.f32 0.0, %v702
    %704 = vmatprep.mubr.f32.mxu0 %v491
    %705 = vmatmul.mubr.f32.gmra.mxu0 %v490
    %v706 = vpop.f32.mrf.mxu0
    %v707 = vadd.f32 0.0, %v706
    %v708 = vpop.f32.mrf.mxu0
    %v709 = vadd.f32 0.0, %v708
    %710 = vmatprep.mubr.f32.mxu0 %v495
    %711 = vmatmul.mubr.f32.gmra.mxu0 %v494
    %v712 = vpop.f32.mrf.mxu0
    %v713 = vadd.f32 0.0, %v712
    %v714 = vpop.f32.mrf.mxu0
    %v715 = vadd.f32 0.0, %v714
    %716 = vmatprep.mubr.f32.mxu0 %v499
    %717 = vmatmul.mubr.f32.gmra.mxu0 %v498
    %v718 = vpop.f32.mrf.mxu0
    %v719 = vadd.f32 0.0, %v718
    %v720 = vpop.f32.mrf.mxu0
    %v721 = vadd.f32 0.0, %v720
    %722 = vmatprep.mubr.f32.mxu0 %v503
    %723 = vmatmul.mubr.f32.gmra.mxu0 %v502
    %v724 = vpop.f32.mrf.mxu0
    %v725 = vadd.f32 0.0, %v724
    %v726 = vpop.f32.mrf.mxu0
    %v727 = vadd.f32 0.0, %v726
    %728 = vdwg.mxu0
    %729 = vmatprep.subr.mxu0 %v601
    %730 = vmatpush1.msra.mxu0 %v600
    %731 = vmatprep.subr.mxu0 %v599
    %732 = vmatpush1.msra.mxu0 %v598
    %733 = vmatprep.subr.mxu0 %v597
    %734 = vmatpush1.msra.mxu0 %v596
    %735 = vmatprep.subr.mxu0 %v595
    %736 = vmatpush1.msra.mxu0 %v594
    %737 = vmatprep.subr.mxu0 %v593
    %738 = vmatpush1.msra.mxu0 %v592
    %739 = vmatprep.subr.mxu0 %v591
    %740 = vmatpush1.msra.mxu0 %v590
    %741 = vmatprep.subr.mxu0 %v589
    %742 = vmatpush1.msra.mxu0 %v588
    %743 = vmatprep.subr.mxu0 %v587
    %744 = vmatpush1.msra.mxu0 %v586
    %745 = vmatprep.subr.mxu0 %v585
    %746 = vmatpush1.msra.mxu0 %v584
    %747 = vmatprep.subr.mxu0 %v583
    %748 = vmatpush1.msra.mxu0 %v582
    %749 = vmatprep.subr.mxu0 %v581
    %750 = vmatpush1.msra.mxu0 %v580
    %751 = vmatprep.subr.mxu0 %v579
    %752 = vmatpush1.msra.mxu0 %v578
    %753 = vmatprep.subr.mxu0 %v577
    %754 = vmatpush1.msra.mxu0 %v576
    %755 = vmatprep.subr.mxu0 %v575
    %756 = vmatpush1.msra.mxu0 %v574
    %757 = vmatprep.subr.mxu0 %v573
    %758 = vmatpush1.msra.mxu0 %v572
    %759 = vmatprep.subr.mxu0 %v571
    %760 = vmatpush1.msra.mxu0 %v570
    %761 = vmatprep.subr.mxu0 %v633
    %762 = vmatpush2.msra.mxu0 %v632
    %763 = vmatprep.subr.mxu0 %v631
    %764 = vmatpush2.msra.mxu0 %v630
    %765 = vmatprep.subr.mxu0 %v629
    %766 = vmatpush2.msra.mxu0 %v628
    %767 = vmatprep.subr.mxu0 %v627
    %768 = vmatpush2.msra.mxu0 %v626
    %769 = vmatprep.subr.mxu0 %v625
    %770 = vmatpush2.msra.mxu0 %v624
    %771 = vmatprep.subr.mxu0 %v623
    %772 = vmatpush2.msra.mxu0 %v622
    %773 = vmatprep.subr.mxu0 %v621
    %774 = vmatpush2.msra.mxu0 %v620
    %775 = vmatprep.subr.mxu0 %v619
    %776 = vmatpush2.msra.mxu0 %v618
    %777 = vmatprep.subr.mxu0 %v617
    %778 = vmatpush2.msra.mxu0 %v616
    %779 = vmatprep.subr.mxu0 %v615
    %780 = vmatpush2.msra.mxu0 %v614
    %781 = vmatprep.subr.mxu0 %v613
    %782 = vmatpush2.msra.mxu0 %v612
    %783 = vmatprep.subr.mxu0 %v611
    %784 = vmatpush2.msra.mxu0 %v610
    %785 = vmatprep.subr.mxu0 %v609
    %786 = vmatpush2.msra.mxu0 %v608
    %787 = vmatprep.subr.mxu0 %v607
    %788 = vmatpush2.msra.mxu0 %v606
    %789 = vmatprep.subr.mxu0 %v605
    %790 = vmatpush2.msra.mxu0 %v604
    %791 = vmatprep.subr.mxu0 %v603
    %792 = vmatpush2.msra.mxu0 %v602
    %793 = vmatprep.mubr.f32.mxu0 %v489
    %794 = vmatmul.mubr.f32.gmra.mxu0 %v488
    %v795 = vpop.f32.mrf.mxu0
    %v796 = vadd.f32 %v701, %v795
    %v797 = vpop.f32.mrf.mxu0
    %v798 = vadd.f32 %v703, %v797
    %799 = vmatprep.mubr.f32.mxu0 %v493
    %800 = vmatmul.mubr.f32.gmra.mxu0 %v492
    %v801 = vpop.f32.mrf.mxu0
    %v802 = vadd.f32 %v707, %v801
    %v803 = vpop.f32.mrf.mxu0
    %v804 = vadd.f32 %v709, %v803
    %805 = vmatprep.mubr.f32.mxu0 %v497
    %806 = vmatmul.mubr.f32.gmra.mxu0 %v496
    %v807 = vpop.f32.mrf.mxu0
    %v808 = vadd.f32 %v713, %v807
    %v809 = vpop.f32.mrf.mxu0
    %v810 = vadd.f32 %v715, %v809
    %811 = vmatprep.mubr.f32.mxu0 %v501
    %812 = vmatmul.mubr.f32.gmra.mxu0 %v500
    %v813 = vpop.f32.mrf.mxu0
    %v814 = vadd.f32 %v719, %v813
    %v815 = vpop.f32.mrf.mxu0
    %v816 = vadd.f32 %v721, %v815
    %817 = vmatprep.mubr.f32.mxu0 %v505
    %818 = vmatmul.mubr.f32.gmra.mxu0 %v504
    %v819 = vpop.f32.mrf.mxu0
    %v820 = vadd.f32 %v725, %v819
    %v821 = vpop.f32.mrf.mxu0
    %v822 = vadd.f32 %v727, %v821
    %823 = vdwg.mxu0
    %v824 = vadd.f32 %v796, %v802
    %v825 = vadd.f32 %v824, %v808
    %v826 = vadd.f32 %v825, %v814
    %v827 = vadd.f32 %v826, %v820
    %v828 = vrot.slane %v827, 4
    %v829 = vadd.f32 %v827, %v828
    %v830 = vrot.slane %v829, 2
    %v831 = vadd.f32 %v829, %v830
    %v832 = vrot.slane %v831, 1
    %v833 = vadd.f32 %v831, %v832
    %v834 = vadd.f32 %v798, %v804
    %v835 = vadd.f32 %v834, %v810
    %v836 = vadd.f32 %v835, %v816
    %v837 = vadd.f32 %v836, %v822
    %v838 = vrot.slane %v837, 4
    %v839 = vadd.f32 %v837, %v838
    %v840 = vrot.slane %v839, 2
    %v841 = vadd.f32 %v839, %v840
    %v842 = vrot.slane %v841, 1
    %v843 = vadd.f32 %v841, %v842
    %v844 = vld [vmem:[%s5] sm:$0x3]
    %v846 = vlaneseq
    %v847 = vshrl.u32 %v846, 7
    %v848 = vsub.s32 0, %v847
    %v849 = vrot.slane %v844, %v848
    %v850 = vlaneseq
    %v851 = vshrl.u32 %v850, 7
    %v852 = vsub.s32 1, %v851
    %v853 = vrot.slane %v844, %v852
    %v856 = vadd.f32 %v833, %v849
    %v857 = vadd.f32 %v843, %v853
    %vm858 = vcmask 1040384
    %v859 = vsel %vm858, %v856, -inf
    %860 = vmax.xlane.f32.xlu0 %v859
    %v861 = vpop.xlane.xlu0 %860
    %v862 = vsub.f32 %v856, %v861
    %v863 = vmul.f32 %v862, 1.442695
    %v864 = vpow.pop %v863
    %v865 = vsel %vm858, %v864, 0.0
    %866 = vadd.xlane.f32.xlu0 %v865
    %v867 = vpop.xlane.xlu0 %866
    %v868 = vlog2.pop %v867
    %v869 = vmul.f32 %v868, 0.6931472
    %v870 = vadd.f32 %v861, %v869
    %v871 = vsub.f32 %v856, %v870
    %v872 = vlaneseq
    %vm873 = vcmp.ge.s32.totalorder %v872, 0
    %vm874 = vcmp.lt.s32.totalorder %v872, 128
    %vm875 = vmand %vm873, %vm874
    %876 = vst.msk [vmem:[#allocation8] sm:$0x1] %vm875, %v871
    %v877 = vsel %vm858, %v857, -inf
    %878 = vmax.xlane.f32.xlu0 %v877
    %v879 = vpop.xlane.xlu0 %878
    %v880 = vsub.f32 %v857, %v879
    %v881 = vmul.f32 %v880, 1.442695
    %v882 = vpow.pop %v881
    %v883 = vsel %vm858, %v882, 0.0
    %884 = vadd.xlane.f32.xlu0 %v883
    %v885 = vpop.xlane.xlu0 %884
    %v886 = vlog2.pop %v885
    %v887 = vmul.f32 %v886, 0.6931472
    %v888 = vadd.f32 %v879, %v887
    %v889 = vsub.f32 %v857, %v888
    %890 = vst.msk [vmem:[#allocation8 + $0x1] sm:$0x1] %vm875, %v889
    // Predicated region
    $region38: #{tpu_custom_call.1} parent=1 // pred_check
      _
    $region39: #{tpu_custom_call.1} parent=1 // pred_check_branch
      %892 = sbr.rel (0) target = $region41
    $region40: #{tpu_custom_call.1} parent=1 // pred_region
      %s894 = ssub.s32 32, 32
      %895 = vsyncadd [#allocation4], %s894
      %s897 = sshll.u32 [#allocation8], 4
      %s898 = int_to_ptr.vmem [resolvable:$true] %s897
      %900 = dma.vmem_to_hbm [thread:$0]  %s898, 32, %s6, [#allocation4]
    $region41: #{tpu_custom_call.1} parent=1 // pred_fallthru
      _
    // Predicated region
    $region42: #{tpu_custom_call.1} parent=1 // pred_check
      _
    $region43: #{tpu_custom_call.1} parent=1 // pred_check_branch
      %902 = sbr.rel (0) target = $region45
    $region44: #{tpu_custom_call.1} parent=1 // pred_region
      %903 = dma.done [#allocation4], 32
    $region45: #{tpu_custom_call.1} parent=1 // pred_fallthru
      _
    %904 = vsyncpa [#allocation3], 1
    %905 = vsyncpa [#allocation6], 1
    %906 = vsyncpa [#allocation4], 1

</llo_original>
